<compile_context>
chip_gen: v7x
topology: tpu7x:2x2x1
jax: 0.10.0
libtpu: 0.0.40
codegen_flags: <defaults>
</compile_context>

<pallas_src>
import jax
import jax.numpy as jnp
from jax.experimental import pallas as pl
from jax.experimental.pallas import tpu as pltpu

_LANE = 128
_SUBLANE = 8
# ~4 MiB blocks: ~86% of HBM roofline, per-grid-step overhead amortized.
# 4 buffers (in+out, double-buffered) = ~16 MiB scoped VMEM -> fits every
# generation once vmem_limit_bytes is passed explicitly.
_TARGET_TILE_BYTES = 4 * 1024 * 1024


def _pow50_kernel(x_ref, o_ref):
    x = x_ref[...]
    # Sub-32-bit float inputs: run the multiply chain in f32 (free — the kernel
    # is DMA-bound) to avoid 7 rounds of low-precision rounding; v5e's VPU has
    # no bf16 path anyway, so this also avoids implicit per-op casts.
    if jnp.issubdtype(x_ref.dtype, jnp.floating) and x_ref.dtype.itemsize < 4:
        x = x.astype(jnp.float32)
    # x ** 50 via square-and-multiply: 50 = 32 + 16 + 2  ->  7 VPU multiplies.
    x2 = x * x
    x4 = x2 * x2
    x8 = x4 * x4
    x16 = x8 * x8
    x32 = x16 * x16
    o_ref[...] = (x32 * x16 * x2).astype(o_ref.dtype)


def _choose_block(b, h, w, itemsize):
    """Pick (bb, bh, bw) targeting ~_TARGET_TILE_BYTES while obeying the TPU
    rule that the last two block dims are (8,128)-multiples or full-extent."""
    # Lane dim: block only when divisible by 128 AND a single row already
    # exceeds the target (rare); otherwise keep full extent (always legal).
    bw = w
    if w % _LANE == 0 and w * itemsize > _TARGET_TILE_BYTES:
        bw = max(_LANE, (_TARGET_TILE_BYTES // itemsize) // _LANE * _LANE)
    row_bytes = bw * itemsize
    # Sublane dim: block in multiples of 8 when a full (h, bw) slab is too big;
    # the last partial block is masked by Pallas.
    bh = h
    if h * row_bytes > _TARGET_TILE_BYTES:
        bh = max(_SUBLANE, (_TARGET_TILE_BYTES // row_bytes) // _SUBLANE * _SUBLANE)
        bh = min(bh, h)
    # Leading (collapsed batch) dim: unconstrained; fill up to the target.
    slab_bytes = bh * bw * itemsize
    bb = min(b, max(1, _TARGET_TILE_BYTES // slab_bytes))
    return bb, bh, bw


@jax.jit
def act_op(x):
    """Elementwise x ** 50 computed in a Pallas TPU kernel."""
    orig_shape = x.shape
    itemsize = jnp.dtype(x.dtype).itemsize

    # Normalize to 3-D (batch, h, w) WITHOUT touching the minor two dims:
    # collapsing / adding LEADING dims never changes the (8,128)-tiled physical
    # layout, so these reshapes are bitcasts (no HBM relayout pass).
    if x.ndim == 0:
        x3 = x.reshape(1, 1, 1)
    elif x.ndim == 1:
        x3 = x.reshape(1, 1, x.shape[0])
    elif x.ndim == 2:
        x3 = x.reshape(1, *x.shape)
    else:
        x3 = x.reshape(-1, x.shape[-2], x.shape[-1])

    b, h, w = x3.shape
    bb, bh, bw = _choose_block(b, h, w, itemsize)
    grid = (pl.cdiv(b, bb), pl.cdiv(h, bh), pl.cdiv(w, bw))

    tile_bytes = bb * bh * bw * itemsize
    # in + out, double-buffered (4 buffers) + slack; floored at the v5e 16 MiB
    # scoped default.  At the 4 MiB target tile this is ~18 MiB: above the v5e
    # default (hence explicit), well under v7x's 32 MiB scoped / 64 MiB physical.
    # TODO(synk): shapes whose minor two dims are huge AND non-(8,128)-divisible
    # fall back to a full-slab block and may need a larger limit.
    vmem_limit = int(max(16 * 1024 * 1024, 4 * tile_bytes + (2 << 20)))

    out3 = pl.pallas_call(
        _pow50_kernel,
        out_shape=jax.ShapeDtypeStruct(x3.shape, x.dtype),
        grid=grid,
        in_specs=[pl.BlockSpec((bb, bh, bw), lambda i, j, k: (i, j, k))],
        out_specs=pl.BlockSpec((bb, bh, bw), lambda i, j, k: (i, j, k)),
        compiler_params=pltpu.CompilerParams(
            # "parallel" lets the runtime shard independent grid steps across
            # TensorCores on megacore parts.
            # TODO(synk): if a v7x profile shows a single TC running every grid
            # step, switch to (pltpu.CORE_PARALLEL, ...) semantics.
            dimension_semantics=("parallel", "parallel", "parallel"),
            vmem_limit_bytes=vmem_limit,
        ),
        # Deliberately no input_output_aliases: the input is a (bitcast of a)
        # non-donated jit parameter, so declaring an alias would force XLA to
        # insert a defensive copy (an extra HBM pass) instead of saving one.
    )(x3)

    return out3.reshape(orig_shape)


if __name__ == "__main__":
    key = jax.random.PRNGKey(0)
    # Small NCHW input consistent with a conv-style module: batch=2, C=4, 16x16.
    x = jax.random.uniform(key, (2, 4, 16, 16), dtype=jnp.float32,
                           minval=0.5, maxval=1.5)

    y = act_op(x)
    jax.block_until_ready(y)

    # Sanity check against plain JAX reference.
    y_ref = x ** 50
    assert y.shape == x.shape and y.dtype == x.dtype
    assert jnp.allclose(y, y_ref, rtol=1e-5, atol=1e-5), "mismatch vs reference"

    print("KERNEL_OK")
</pallas_src>

<mosaic_0001>
module attributes {stable_mosaic.version = 11 : i64} {
  func.func @_pow50_kernel(%arg0: i32, %arg1: i32, %arg2: i32, %arg3: memref<8x16x16xf32, #tpu.memory_space<vmem>>, %arg4: memref<8x16x16xf32, #tpu.memory_space<vmem>>) attributes {dimension_semantics = [#tpu.dimension_semantics<parallel>, #tpu.dimension_semantics<parallel>, #tpu.dimension_semantics<parallel>], iteration_bounds = array<i64: 1, 1, 1>, scalar_prefetch = 0 : i64, scratch_operands = 0 : i64, tpu.core_type = #tpu.core_type<tc>, window_params = [{transform_indices = @transform_0, window_bounds = array<i64: 8, 16, 16>}, {transform_indices = @transform_1, window_bounds = array<i64: 8, 16, 16>}]} {
    %c0 = arith.constant 0 : index
    %c0_0 = arith.constant 0 : index
    %c0_1 = arith.constant 0 : index
    %0 = vector.load %arg3[%c0, %c0_0, %c0_1] : memref<8x16x16xf32, #tpu.memory_space<vmem>>, vector<8x16x16xf32>
    %1 = arith.mulf %0, %0 : vector<8x16x16xf32>
    %2 = arith.mulf %1, %1 : vector<8x16x16xf32>
    %3 = arith.mulf %2, %2 : vector<8x16x16xf32>
    %4 = arith.mulf %3, %3 : vector<8x16x16xf32>
    %5 = arith.mulf %4, %4 : vector<8x16x16xf32>
    %6 = arith.mulf %5, %4 : vector<8x16x16xf32>
    %7 = arith.mulf %6, %1 : vector<8x16x16xf32>
    %c0_2 = arith.constant 0 : index
    %c0_3 = arith.constant 0 : index
    %c0_4 = arith.constant 0 : index
    %8 = vector.load %arg4[%c0_2, %c0_3, %c0_4] : memref<8x16x16xf32, #tpu.memory_space<vmem>>, vector<8x16x16xf32>
    tpu.vector_store %arg4[%c0_2, %c0_3, %c0_4], %7 {strides = array<i32>} : memref<8x16x16xf32, #tpu.memory_space<vmem>>, vector<8x16x16xf32>,
    return
  }
  func.func @transform_0(%arg0: i32, %arg1: i32, %arg2: i32) -> (i32, i32, i32) {
    %c0_i32 = arith.constant 0 : i32
    return %arg0, %arg1, %arg2 : i32, i32, i32
  }
  func.func @transform_1(%arg0: i32, %arg1: i32, %arg2: i32) -> (i32, i32, i32) {
    %c0_i32 = arith.constant 0 : i32
    return %arg0, %arg1, %arg2 : i32, i32, i32
  }
}

</mosaic_0001>

<llo_original>
// kernel: act_op.1
$region0: #{act_op.1}
  #allocation0 [shape = 'u32[]', space=smem, size = 0x4, offset = 0x4, fixed_abs, tag = 'smem constant byte address 0x4 - core index']
  #allocation1 [shape = 'u32[144,128]{1,0:T(1,128)}', space=vmem, size = 0x12000, scoped, tag = 'internal scratch']
  %s0 = inlined_call_operand.hbm [shape: f32[8,16,16], index: 0, kind: input, shape index: {}]
  %s1 = inlined_call_operand.hbm [shape: f32[8,16,16], index: 1, kind: output, shape index: {}]
  %s2 = sld [smem:[#allocation0]]
  $region18: #{act_op.1} parent=0
    _
  %s4 = ssub.s32 1, %s2
  %s5 = scalar_select 0, %s4, %s2
  $region1: #{act_op.1} parent=0
    #allocation2 [shape = 'u8[65536]{0}', space=vmem, size = 0x10000, scoped, tag = 'input window, operand 0, single buffered']
    #allocation3 [shape = 's32[1]{0}', space=sflag, size = 0x4, scoped, tag = 'scoped memory for act_op.1']
    #allocation4 [shape = 's32[1]{0}', space=sflag, size = 0x4, scoped, tag = 'scoped memory for act_op.1']
    #allocation5 [shape = 'u8[65536]{0}', space=vmem, size = 0x10000, scoped, tag = 'output window, operand 0, single buffered']
    %6 = vsyncpa [#allocation3], 0
    %7 = vsyncpa [#allocation4], 0
    // Predicated region
    $region2: #{act_op.1} parent=1 // pred_check
      _
    $region3: #{act_op.1} parent=1 // pred_check_branch
      %9 = sbr.rel (0) target = $region5
    $region4: #{act_op.1} parent=1 // pred_region
      %s11 = ssub.s32 2048, 2048
      %12 = vsyncadd [#allocation3], %s11
      %s13 = sshll.u32 [#allocation2], 4
      %s14 = int_to_ptr.vmem [resolvable:$true] %s13
      %19 = dma.hbm_to_vmem [thread:$0]  %s0, 2048, %s14, [#allocation3], 128, 128, 8
    $region5: #{act_op.1} parent=1 // pred_fallthru
      _
    // Predicated region
    $region6: #{act_op.1} parent=1 // pred_check
      _
    $region7: #{act_op.1} parent=1 // pred_check_branch
      %21 = sbr.rel (0) target = $region9
    $region8: #{act_op.1} parent=1 // pred_region
      %22 = dma.done [#allocation3], 2048
    $region9: #{act_op.1} parent=1 // pred_fallthru
      _
    %v23 = vld [vmem:[#allocation2] sm:$0xff]
    %v24 = vld [vmem:[#allocation2 + $0x8] sm:$0xff]
    %v25 = vld [vmem:[#allocation2 + $0x10] sm:$0xff]
    %v26 = vld [vmem:[#allocation2 + $0x18] sm:$0xff]
    %v27 = vld [vmem:[#allocation2 + $0x20] sm:$0xff]
    %v28 = vld [vmem:[#allocation2 + $0x28] sm:$0xff]
    %v29 = vld [vmem:[#allocation2 + $0x30] sm:$0xff]
    %v30 = vld [vmem:[#allocation2 + $0x38] sm:$0xff]
    %v31 = vld [vmem:[#allocation2 + $0x40] sm:$0xff]
    %v32 = vld [vmem:[#allocation2 + $0x48] sm:$0xff]
    %v33 = vld [vmem:[#allocation2 + $0x50] sm:$0xff]
    %v34 = vld [vmem:[#allocation2 + $0x58] sm:$0xff]
    %v35 = vld [vmem:[#allocation2 + $0x60] sm:$0xff]
    %v36 = vld [vmem:[#allocation2 + $0x68] sm:$0xff]
    %v37 = vld [vmem:[#allocation2 + $0x70] sm:$0xff]
    %v38 = vld [vmem:[#allocation2 + $0x78] sm:$0xff]
    %v39 = vmul.f32 %v23, %v23
    %v40 = vmul.f32 %v24, %v24
    %v41 = vmul.f32 %v25, %v25
    %v42 = vmul.f32 %v26, %v26
    %v43 = vmul.f32 %v27, %v27
    %v44 = vmul.f32 %v28, %v28
    %v45 = vmul.f32 %v29, %v29
    %v46 = vmul.f32 %v30, %v30
    %v47 = vmul.f32 %v31, %v31
    %v48 = vmul.f32 %v32, %v32
    %v49 = vmul.f32 %v33, %v33
    %v50 = vmul.f32 %v34, %v34
    %v51 = vmul.f32 %v35, %v35
    %v52 = vmul.f32 %v36, %v36
    %v53 = vmul.f32 %v37, %v37
    %v54 = vmul.f32 %v38, %v38
    %v55 = vmul.f32 %v39, %v39
    %v56 = vmul.f32 %v40, %v40
    %v57 = vmul.f32 %v41, %v41
    %v58 = vmul.f32 %v42, %v42
    %v59 = vmul.f32 %v43, %v43
    %v60 = vmul.f32 %v44, %v44
    %v61 = vmul.f32 %v45, %v45
    %v62 = vmul.f32 %v46, %v46
    %v63 = vmul.f32 %v47, %v47
    %v64 = vmul.f32 %v48, %v48
    %v65 = vmul.f32 %v49, %v49
    %v66 = vmul.f32 %v50, %v50
    %v67 = vmul.f32 %v51, %v51
    %v68 = vmul.f32 %v52, %v52
    %v69 = vmul.f32 %v53, %v53
    %v70 = vmul.f32 %v54, %v54
    %v71 = vmul.f32 %v55, %v55
    %v72 = vmul.f32 %v56, %v56
    %v73 = vmul.f32 %v57, %v57
    %v74 = vmul.f32 %v58, %v58
    %v75 = vmul.f32 %v59, %v59
    %v76 = vmul.f32 %v60, %v60
    %v77 = vmul.f32 %v61, %v61
    %v78 = vmul.f32 %v62, %v62
    %v79 = vmul.f32 %v63, %v63
    %v80 = vmul.f32 %v64, %v64
    %v81 = vmul.f32 %v65, %v65
    %v82 = vmul.f32 %v66, %v66
    %v83 = vmul.f32 %v67, %v67
    %v84 = vmul.f32 %v68, %v68
    %v85 = vmul.f32 %v69, %v69
    %v86 = vmul.f32 %v70, %v70
    %v87 = vmul.f32 %v71, %v71
    %v88 = vmul.f32 %v72, %v72
    %v89 = vmul.f32 %v73, %v73
    %v90 = vmul.f32 %v74, %v74
    %v91 = vmul.f32 %v75, %v75
    %v92 = vmul.f32 %v76, %v76
    %v93 = vmul.f32 %v77, %v77
    %v94 = vmul.f32 %v78, %v78
    %v95 = vmul.f32 %v79, %v79
    %v96 = vmul.f32 %v80, %v80
    %v97 = vmul.f32 %v81, %v81
    %v98 = vmul.f32 %v82, %v82
    %v99 = vmul.f32 %v83, %v83
    %v100 = vmul.f32 %v84, %v84
    %v101 = vmul.f32 %v85, %v85
    %v102 = vmul.f32 %v86, %v86
    %v103 = vmul.f32 %v87, %v87
    %v104 = vmul.f32 %v88, %v88
    %v105 = vmul.f32 %v89, %v89
    %v106 = vmul.f32 %v90, %v90
    %v107 = vmul.f32 %v91, %v91
    %v108 = vmul.f32 %v92, %v92
    %v109 = vmul.f32 %v93, %v93
    %v110 = vmul.f32 %v94, %v94
    %v111 = vmul.f32 %v95, %v95
    %v112 = vmul.f32 %v96, %v96
    %v113 = vmul.f32 %v97, %v97
    %v114 = vmul.f32 %v98, %v98
    %v115 = vmul.f32 %v99, %v99
    %v116 = vmul.f32 %v100, %v100
    %v117 = vmul.f32 %v101, %v101
    %v118 = vmul.f32 %v102, %v102
    %v119 = vmul.f32 %v103, %v87
    %v120 = vmul.f32 %v104, %v88
    %v121 = vmul.f32 %v105, %v89
    %v122 = vmul.f32 %v106, %v90
    %v123 = vmul.f32 %v107, %v91
    %v124 = vmul.f32 %v108, %v92
    %v125 = vmul.f32 %v109, %v93
    %v126 = vmul.f32 %v110, %v94
    %v127 = vmul.f32 %v111, %v95
    %v128 = vmul.f32 %v112, %v96
    %v129 = vmul.f32 %v113, %v97
    %v130 = vmul.f32 %v114, %v98
    %v131 = vmul.f32 %v115, %v99
    %v132 = vmul.f32 %v116, %v100
    %v133 = vmul.f32 %v117, %v101
    %v134 = vmul.f32 %v118, %v102
    %v135 = vmul.f32 %v119, %v39
    %v136 = vmul.f32 %v120, %v40
    %v137 = vmul.f32 %v121, %v41
    %v138 = vmul.f32 %v122, %v42
    %v139 = vmul.f32 %v123, %v43
    %v140 = vmul.f32 %v124, %v44
    %v141 = vmul.f32 %v125, %v45
    %v142 = vmul.f32 %v126, %v46
    %v143 = vmul.f32 %v127, %v47
    %v144 = vmul.f32 %v128, %v48
    %v145 = vmul.f32 %v129, %v49
    %v146 = vmul.f32 %v130, %v50
    %v147 = vmul.f32 %v131, %v51
    %v148 = vmul.f32 %v132, %v52
    %v149 = vmul.f32 %v133, %v53
    %v150 = vmul.f32 %v134, %v54
    %vm151 = vcmask 130048
    %152 = vst.msk [vmem:[#allocation5] sm:$0xff] %vm151, %v135
    %153 = vst.msk [vmem:[#allocation5 + $0x8] sm:$0xff] %vm151, %v136
    %154 = vst.msk [vmem:[#allocation5 + $0x10] sm:$0xff] %vm151, %v137
    %155 = vst.msk [vmem:[#allocation5 + $0x18] sm:$0xff] %vm151, %v138
    %156 = vst.msk [vmem:[#allocation5 + $0x20] sm:$0xff] %vm151, %v139
    %157 = vst.msk [vmem:[#allocation5 + $0x28] sm:$0xff] %vm151, %v140
    %158 = vst.msk [vmem:[#allocation5 + $0x30] sm:$0xff] %vm151, %v141
    %159 = vst.msk [vmem:[#allocation5 + $0x38] sm:$0xff] %vm151, %v142
    %160 = vst.msk [vmem:[#allocation5 + $0x40] sm:$0xff] %vm151, %v143
    %161 = vst.msk [vmem:[#allocation5 + $0x48] sm:$0xff] %vm151, %v144
    %162 = vst.msk [vmem:[#allocation5 + $0x50] sm:$0xff] %vm151, %v145
    %163 = vst.msk [vmem:[#allocation5 + $0x58] sm:$0xff] %vm151, %v146
    %164 = vst.msk [vmem:[#allocation5 + $0x60] sm:$0xff] %vm151, %v147
    %165 = vst.msk [vmem:[#allocation5 + $0x68] sm:$0xff] %vm151, %v148
    %166 = vst.msk [vmem:[#allocation5 + $0x70] sm:$0xff] %vm151, %v149
    %167 = vst.msk [vmem:[#allocation5 + $0x78] sm:$0xff] %vm151, %v150
    // Predicated region
    $region10: #{act_op.1} parent=1 // pred_check
      _
    $region11: #{act_op.1} parent=1 // pred_check_branch
      %169 = sbr.rel (0) target = $region13
    $region12: #{act_op.1} parent=1 // pred_region
      %s171 = ssub.s32 2048, 2048
      %172 = vsyncadd [#allocation4], %s171
      %s173 = sshll.u32 [#allocation5], 4
      %s174 = int_to_ptr.vmem [resolvable:$true] %s173
      %179 = dma.vmem_to_hbm [thread:$0]  %s174, 2048, %s1, [#allocation4], 128, 128, 8
    $region13: #{act_op.1} parent=1 // pred_fallthru
      _
    // Predicated region
    $region14: #{act_op.1} parent=1 // pred_check
      _
    $region15: #{act_op.1} parent=1 // pred_check_branch
      %181 = sbr.rel (0) target = $region17
    $region16: #{act_op.1} parent=1 // pred_region
      %182 = dma.done [#allocation4], 2048
    $region17: #{act_op.1} parent=1 // pred_fallthru
      _
    %183 = vsyncpa [#allocation3], 1
    %184 = vsyncpa [#allocation4], 1

</llo_original>
